<compile_context>
chip_gen: v5e
topology: v5e:2x2
jax: 0.10.0
libtpu: 0.0.40
codegen_flags: <defaults>
</compile_context>

<pallas_src>
import jax
import jax.numpy as jnp
from jax.experimental import pallas as pl
from jax.experimental.pallas import tpu as pltpu


def _round_up(n, m):
    return ((n + m - 1) // m) * m


def _mlp_kernel(x_ref,
                w1_ref, b1_ref,
                w2_ref, b2_ref,
                w3_ref, b3_ref,
                w4_ref, b4_ref,
                o_ref):
    """Fused 4-layer MLP for one batch tile. All weights resident in VMEM.

    MXU inputs use the storage dtype of x/W (f32 or bf16); accumulation, bias-add
    and ReLU are always f32.
    """
    cdt = w1_ref.dtype  # MXU-input dtype (f32 or bf16)

    x = x_ref[...]
    h = jnp.dot(x, w1_ref[...], preferred_element_type=jnp.float32) + b1_ref[...]
    h = jnp.maximum(h, 0.0)

    h = jnp.dot(h.astype(cdt), w2_ref[...], preferred_element_type=jnp.float32) + b2_ref[...]
    h = jnp.maximum(h, 0.0)

    h = jnp.dot(h.astype(cdt), w3_ref[...], preferred_element_type=jnp.float32) + b3_ref[...]
    h = jnp.maximum(h, 0.0)

    h = jnp.dot(h.astype(cdt), w4_ref[...], preferred_element_type=jnp.float32) + b4_ref[...]

    o_ref[...] = h.astype(o_ref.dtype)


def fcn_feature_extractor(x, params, *, batch_tile=128, compute_dtype=None):
    """Apply the 4-layer MLP via a single fused Pallas kernel.

    x: [B, input_dim] float32
    params: dict with w1..w4 ([in, out], f32) and b1..b4 ([1, out], f32)
    batch_tile: rows per grid step (rounded to a multiple of 8; clamped for tiny B).
    compute_dtype: optional MXU-input dtype (e.g. jnp.bfloat16 on v6e/v7x).
    """
    B, input_dim = x.shape
    output_dim = params["w4"].shape[1]
    cdt = x.dtype if compute_dtype is None else compute_dtype

    # --- batch tiling: multiple of 8 sublanes, clamp so tiny batches aren't over-padded.
    tile = _round_up(max(8, min(batch_tile, _round_up(B, 8))), 8)
    B_pad = _round_up(B, tile)
    xp = x if B_pad == B else jnp.pad(x, ((0, B_pad - B), (0, 0)))
    xp = xp.astype(cdt)

    # --- lane-dense output: pad final out-features up to a 128 multiple.
    out_pad = _round_up(output_dim, 128)

    w1 = params["w1"].astype(cdt)
    w2 = params["w2"].astype(cdt)
    w3 = params["w3"].astype(cdt)
    w4 = params["w4"].astype(cdt)
    b1 = params["b1"].astype(jnp.float32)
    b2 = params["b2"].astype(jnp.float32)
    b3 = params["b3"].astype(jnp.float32)
    b4 = params["b4"].astype(jnp.float32)
    if out_pad != output_dim:
        w4 = jnp.pad(w4, ((0, 0), (0, out_pad - output_dim)))
        b4 = jnp.pad(b4, ((0, 0), (0, out_pad - output_dim)))

    grid = (B_pad // tile,)

    def resident(shape):
        # weights/biases: same block every grid step -> kept resident in VMEM
        return pl.BlockSpec(shape, lambda i: (0, 0))

    out = pl.pallas_call(
        _mlp_kernel,
        out_shape=jax.ShapeDtypeStruct((B_pad, out_pad), x.dtype),
        grid_spec=pltpu.PrefetchScalarGridSpec(
            num_scalar_prefetch=0,
            grid=grid,
            in_specs=[
                pl.BlockSpec((tile, input_dim), lambda i: (i, 0)),  # x tile
                resident(w1.shape), resident(b1.shape),
                resident(w2.shape), resident(b2.shape),
                resident(w3.shape), resident(b3.shape),
                resident(w4.shape), resident(b4.shape),
            ],
            out_specs=pl.BlockSpec((tile, out_pad), lambda i: (i, 0)),
        ),
        compiler_params=pltpu.CompilerParams(
            dimension_semantics=("parallel",),
        ),
    )(xp, w1, b1, w2, b2, w3, b3, w4, b4)

    # strip batch padding and lane padding in the wrapper
    return out[:B, :output_dim]


def init_params(key, input_dim, output_dim):
    """Deterministic init matching nn.Linear layer shapes (stored transposed)."""
    dims = [(input_dim, 256), (256, 512), (512, 128), (128, output_dim)]
    params = {}
    for idx, (fan_in, fan_out) in enumerate(dims, start=1):
        key, kw, kb = jax.random.split(key, 3)
        bound = 1.0 / jnp.sqrt(fan_in)
        params[f"w{idx}"] = jax.random.uniform(
            kw, (fan_in, fan_out), jnp.float32, -bound, bound)
        params[f"b{idx}"] = jax.random.uniform(
            kb, (1, fan_out), jnp.float32, -bound, bound)
    return params


if __name__ == "__main__":
    input_dim = 32
    output_dim = 64
    batch = 16

    key = jax.random.PRNGKey(0)
    key, kx = jax.random.split(key)
    x = jax.random.normal(kx, (batch, input_dim), jnp.float32)
    params = init_params(key, input_dim, output_dim)

    # f32 path (default)
    out = jax.block_until_ready(fcn_feature_extractor(x, params))

    # Pure-JAX reference
    def ref(x, p):
        h = jnp.maximum(x @ p["w1"] + p["b1"], 0.0)
        h = jnp.maximum(h @ p["w2"] + p["b2"], 0.0)
        h = jnp.maximum(h @ p["w3"] + p["b3"], 0.0)
        return h @ p["w4"] + p["b4"]

    expected = ref(x, params)
    assert out.shape == (batch, output_dim)
    assert jnp.allclose(out, expected, atol=1e-4, rtol=1e-4)

    # bf16 MXU-input path (recommended on v6e/v7x); looser tolerance.
    out_bf16 = jax.block_until_ready(
        fcn_feature_extractor(x, params, compute_dtype=jnp.bfloat16))
    assert out_bf16.shape == (batch, output_dim)
    assert jnp.allclose(out_bf16, expected, atol=1e-1, rtol=1e-1)

    print("KERNEL_OK")
</pallas_src>

<mosaic_0001>
module attributes {stable_mosaic.version = 11 : i64} {
  func.func @_mlp_kernel(%arg0: i32, %arg1: memref<16x32xf32, #tpu.memory_space<vmem>>, %arg2: memref<32x256xf32, #tpu.memory_space<vmem>>, %arg3: memref<1x256xf32, #tpu.memory_space<vmem>>, %arg4: memref<256x512xf32, #tpu.memory_space<vmem>>, %arg5: memref<1x512xf32, #tpu.memory_space<vmem>>, %arg6: memref<512x128xf32, #tpu.memory_space<vmem>>, %arg7: memref<1x128xf32, #tpu.memory_space<vmem>>, %arg8: memref<128x128xf32, #tpu.memory_space<vmem>>, %arg9: memref<1x128xf32, #tpu.memory_space<vmem>>, %arg10: memref<16x128xf32, #tpu.memory_space<vmem>>) attributes {dimension_semantics = [#tpu.dimension_semantics<parallel>], iteration_bounds = array<i64: 1>, scalar_prefetch = 0 : i64, scratch_operands = 0 : i64, tpu.core_type = #tpu.core_type<tc>, window_params = [{transform_indices = @transform_0, window_bounds = array<i64: 16, 32>}, {pipeline_mode = #tpu.pipeline_mode<synchronous>, transform_indices = @transform_1, window_bounds = array<i64: 32, 256>}, {pipeline_mode = #tpu.pipeline_mode<synchronous>, transform_indices = @transform_2, window_bounds = array<i64: 1, 256>}, {pipeline_mode = #tpu.pipeline_mode<synchronous>, transform_indices = @transform_3, window_bounds = array<i64: 256, 512>}, {pipeline_mode = #tpu.pipeline_mode<synchronous>, transform_indices = @transform_4, window_bounds = array<i64: 1, 512>}, {pipeline_mode = #tpu.pipeline_mode<synchronous>, transform_indices = @transform_5, window_bounds = array<i64: 512, 128>}, {pipeline_mode = #tpu.pipeline_mode<synchronous>, transform_indices = @transform_6, window_bounds = array<i64: 1, 128>}, {pipeline_mode = #tpu.pipeline_mode<synchronous>, transform_indices = @transform_7, window_bounds = array<i64: 128, 128>}, {pipeline_mode = #tpu.pipeline_mode<synchronous>, transform_indices = @transform_8, window_bounds = array<i64: 1, 128>}, {transform_indices = @transform_9, window_bounds = array<i64: 16, 128>}]} {
    %c0 = arith.constant 0 : index
    %c0_0 = arith.constant 0 : index
    %0 = vector.load %arg1[%c0, %c0_0] : memref<16x32xf32, #tpu.memory_space<vmem>>, vector<16x32xf32>
    %c0_1 = arith.constant 0 : index
    %c0_2 = arith.constant 0 : index
    %1 = vector.load %arg2[%c0_1, %c0_2] : memref<32x256xf32, #tpu.memory_space<vmem>>, vector<32x256xf32>
    %cst = arith.constant dense<0.000000e+00> : vector<16x256xf32>
    %2 = tpu.matmul %0, %1, %cst {dimension_numbers = #tpu.dot_dimension_numbers<[1], [0], [0], [1], [0, 0, 1, 1], [], []>} : vector<16x32xf32>, vector<32x256xf32>, vector<16x256xf32> -> vector<16x256xf32>
    %c0_3 = arith.constant 0 : index
    %c0_4 = arith.constant 0 : index
    %3 = vector.load %arg3[%c0_3, %c0_4] : memref<1x256xf32, #tpu.memory_space<vmem>>, vector<1x256xf32>
    %4 = vector.broadcast %3 : vector<1x256xf32> to vector<16x256xf32>
    %5 = arith.addf %2, %4 : vector<16x256xf32>
    %cst_5 = arith.constant 0.000000e+00 : f32
    %6 = vector.broadcast %cst_5 : f32 to vector<16x256xf32>
    %7 = arith.maximumf %5, %6 : vector<16x256xf32>
    %c0_6 = arith.constant 0 : index
    %c0_7 = arith.constant 0 : index
    %8 = vector.load %arg4[%c0_6, %c0_7] : memref<256x512xf32, #tpu.memory_space<vmem>>, vector<256x512xf32>
    %cst_8 = arith.constant dense<0.000000e+00> : vector<16x512xf32>
    %9 = tpu.matmul %7, %8, %cst_8 {dimension_numbers = #tpu.dot_dimension_numbers<[1], [0], [0], [1], [0, 0, 1, 1], [], []>} : vector<16x256xf32>, vector<256x512xf32>, vector<16x512xf32> -> vector<16x512xf32>
    %c0_9 = arith.constant 0 : index
    %c0_10 = arith.constant 0 : index
    %10 = vector.load %arg5[%c0_9, %c0_10] : memref<1x512xf32, #tpu.memory_space<vmem>>, vector<1x512xf32>
    %11 = vector.broadcast %10 : vector<1x512xf32> to vector<16x512xf32>
    %12 = arith.addf %9, %11 : vector<16x512xf32>
    %cst_11 = arith.constant 0.000000e+00 : f32
    %13 = vector.broadcast %cst_11 : f32 to vector<16x512xf32>
    %14 = arith.maximumf %12, %13 : vector<16x512xf32>
    %c0_12 = arith.constant 0 : index
    %c0_13 = arith.constant 0 : index
    %15 = vector.load %arg6[%c0_12, %c0_13] : memref<512x128xf32, #tpu.memory_space<vmem>>, vector<512x128xf32>
    %cst_14 = arith.constant dense<0.000000e+00> : vector<16x128xf32>
    %16 = tpu.matmul %14, %15, %cst_14 {dimension_numbers = #tpu.dot_dimension_numbers<[1], [0], [0], [1], [0, 0, 1, 1], [], []>} : vector<16x512xf32>, vector<512x128xf32>, vector<16x128xf32> -> vector<16x128xf32>
    %c0_15 = arith.constant 0 : index
    %c0_16 = arith.constant 0 : index
    %17 = vector.load %arg7[%c0_15, %c0_16] : memref<1x128xf32, #tpu.memory_space<vmem>>, vector<1x128xf32>
    %18 = vector.broadcast %17 : vector<1x128xf32> to vector<16x128xf32>
    %19 = arith.addf %16, %18 : vector<16x128xf32>
    %cst_17 = arith.constant 0.000000e+00 : f32
    %20 = vector.broadcast %cst_17 : f32 to vector<16x128xf32>
    %21 = arith.maximumf %19, %20 : vector<16x128xf32>
    %c0_18 = arith.constant 0 : index
    %c0_19 = arith.constant 0 : index
    %22 = vector.load %arg8[%c0_18, %c0_19] : memref<128x128xf32, #tpu.memory_space<vmem>>, vector<128x128xf32>
    %cst_20 = arith.constant dense<0.000000e+00> : vector<16x128xf32>
    %23 = tpu.matmul %21, %22, %cst_20 {dimension_numbers = #tpu.dot_dimension_numbers<[1], [0], [0], [1], [0, 0, 1, 1], [], []>} : vector<16x128xf32>, vector<128x128xf32>, vector<16x128xf32> -> vector<16x128xf32>
    %c0_21 = arith.constant 0 : index
    %c0_22 = arith.constant 0 : index
    %24 = vector.load %arg9[%c0_21, %c0_22] : memref<1x128xf32, #tpu.memory_space<vmem>>, vector<1x128xf32>
    %25 = vector.broadcast %24 : vector<1x128xf32> to vector<16x128xf32>
    %26 = arith.addf %23, %25 : vector<16x128xf32>
    %c0_23 = arith.constant 0 : index
    %c0_24 = arith.constant 0 : index
    %27 = vector.load %arg10[%c0_23, %c0_24] : memref<16x128xf32, #tpu.memory_space<vmem>>, vector<16x128xf32>
    tpu.vector_store %arg10[%c0_23, %c0_24], %26 {strides = array<i32>} : memref<16x128xf32, #tpu.memory_space<vmem>>, vector<16x128xf32>,
    return
  }
  func.func @transform_0(%arg0: i32) -> (i32, i32) {
    %c0_i32 = arith.constant 0 : i32
    %c0_i32_0 = arith.constant 0 : i32
    return %arg0, %c0_i32 : i32, i32
  }
  func.func @transform_1(%arg0: i32) -> (i32, i32) {
    %c0_i32 = arith.constant 0 : i32
    %c0_i32_0 = arith.constant 0 : i32
    %c0_i32_1 = arith.constant 0 : i32
    return %c0_i32, %c0_i32_0 : i32, i32
  }
  func.func @transform_2(%arg0: i32) -> (i32, i32) {
    %c0_i32 = arith.constant 0 : i32
    %c0_i32_0 = arith.constant 0 : i32
    %c0_i32_1 = arith.constant 0 : i32
    return %c0_i32, %c0_i32_0 : i32, i32
  }
  func.func @transform_3(%arg0: i32) -> (i32, i32) {
    %c0_i32 = arith.constant 0 : i32
    %c0_i32_0 = arith.constant 0 : i32
    %c0_i32_1 = arith.constant 0 : i32
    return %c0_i32, %c0_i32_0 : i32, i32
  }
  func.func @transform_4(%arg0: i32) -> (i32, i32) {
    %c0_i32 = arith.constant 0 : i32
    %c0_i32_0 = arith.constant 0 : i32
    %c0_i32_1 = arith.constant 0 : i32
    return %c0_i32, %c0_i32_0 : i32, i32
  }
  func.func @transform_5(%arg0: i32) -> (i32, i32) {
    %c0_i32 = arith.constant 0 : i32
    %c0_i32_0 = arith.constant 0 : i32
    %c0_i32_1 = arith.constant 0 : i32
    return %c0_i32, %c0_i32_0 : i32, i32
  }
  func.func @transform_6(%arg0: i32) -> (i32, i32) {
    %c0_i32 = arith.constant 0 : i32
    %c0_i32_0 = arith.constant 0 : i32
    %c0_i32_1 = arith.constant 0 : i32
    return %c0_i32, %c0_i32_0 : i32, i32
  }
  func.func @transform_7(%arg0: i32) -> (i32, i32) {
    %c0_i32 = arith.constant 0 : i32
    %c0_i32_0 = arith.constant 0 : i32
    %c0_i32_1 = arith.constant 0 : i32
    return %c0_i32, %c0_i32_0 : i32, i32
  }
  func.func @transform_8(%arg0: i32) -> (i32, i32) {
    %c0_i32 = arith.constant 0 : i32
    %c0_i32_0 = arith.constant 0 : i32
    %c0_i32_1 = arith.constant 0 : i32
    return %c0_i32, %c0_i32_0 : i32, i32
  }
  func.func @transform_9(%arg0: i32) -> (i32, i32) {
    %c0_i32 = arith.constant 0 : i32
    %c0_i32_0 = arith.constant 0 : i32
    return %arg0, %c0_i32 : i32, i32
  }
}

</mosaic_0001>

<llo_original>
// kernel: tpu_custom_call.1
$region0: #{tpu_custom_call.1}
  #allocation0 [shape = 'u32[]', space=smem, size = 0x4, offset = 0x4, fixed_abs, tag = 'smem constant byte address 0x4 - core index']
  #allocation1 [shape = 'u32[72,128]{1,0:T(1,128)}', space=vmem, size = 0x9000, scoped, tag = 'internal scratch']
  %s0 = inlined_call_operand.hbm [shape: f32[16,32], index: 0, kind: input, shape index: {}]
  %s1 = inlined_call_operand.hbm [shape: f32[32,256], index: 1, kind: input, shape index: {}]
  %s2 = inlined_call_operand.hbm [shape: f32[1,256], index: 2, kind: input, shape index: {}]
  %s3 = inlined_call_operand.hbm [shape: f32[256,512], index: 3, kind: input, shape index: {}]
  %s4 = inlined_call_operand.hbm [shape: f32[1,512], index: 4, kind: input, shape index: {}]
  %s5 = inlined_call_operand.hbm [shape: f32[512,128], index: 5, kind: input, shape index: {}]
  %s6 = inlined_call_operand.vmem [shape: f32[1,128], index: 6, kind: input, shape index: {}]
  %s7 = inlined_call_operand.hbm [shape: f32[128,128], index: 7, kind: input, shape index: {}]
  %s8 = inlined_call_operand.vmem [shape: f32[1,128], index: 8, kind: input, shape index: {}]
  %s9 = inlined_call_operand.hbm [shape: f32[16,128], index: 9, kind: output, shape index: {}]
  %s10 = sld [smem:[#allocation0]]
  $region74: #{tpu_custom_call.1} parent=0
    _
  %s12 = ssub.s32 1, %s10
  %s13 = scalar_select 0, %s12, %s10
  $region1: #{tpu_custom_call.1} parent=0
    #allocation2 [shape = 'u8[8192]{0}', space=vmem, size = 0x2000, scoped, tag = 'input window, operand 0, single buffered']
    #allocation3 [shape = 's32[1]{0}', space=sflag, size = 0x4, scoped, tag = 'scoped memory for tpu_custom_call.1']
    #allocation4 [shape = 's32[1]{0}', space=sflag, size = 0x4, scoped, tag = 'scoped memory for tpu_custom_call.1']
    #allocation5 [shape = 'u8[32768]{0}', space=vmem, size = 0x8000, scoped, tag = 'input window, operand 1, single buffered']
    #allocation6 [shape = 's32[1]{0}', space=sflag, size = 0x4, scoped, tag = 'scoped memory for tpu_custom_call.1']
    #allocation7 [shape = 'u8[1024]{0}', space=vmem, size = 0x400, scoped, tag = 'input window, operand 2, single buffered']
    #allocation8 [shape = 'u8[524288]{0}', space=vmem, size = 0x80000, scoped, tag = 'input window, operand 3, single buffered']
    #allocation9 [shape = 's32[1]{0}', space=sflag, size = 0x4, scoped, tag = 'scoped memory for tpu_custom_call.1']
    #allocation10 [shape = 'u8[2048]{0}', space=vmem, size = 0x800, scoped, tag = 'input window, operand 4, single buffered']
    #allocation11 [shape = 'u8[262144]{0}', space=vmem, size = 0x40000, scoped, tag = 'input window, operand 5, single buffered']
    #allocation12 [shape = 's32[1]{0}', space=sflag, size = 0x4, scoped, tag = 'scoped memory for tpu_custom_call.1']
    #allocation13 [shape = 'u8[65536]{0}', space=vmem, size = 0x10000, scoped, tag = 'input window, operand 7, single buffered']
    #allocation14 [shape = 'u8[8192]{0}', space=vmem, size = 0x2000, scoped, tag = 'output window, operand 0, single buffered']
    %14 = vsyncpa [#allocation3], 0
    %15 = vsyncpa [#allocation6], 0
    %16 = vsyncpa [#allocation9], 0
    %17 = vsyncpa [#allocation12], 0
    %18 = vsyncpa [#allocation4], 0
    // Predicated region
    $region2: #{tpu_custom_call.1} parent=1 // pred_check
      _
    $region3: #{tpu_custom_call.1} parent=1 // pred_check_branch
      %20 = sbr.rel (0) target = $region5
    $region4: #{tpu_custom_call.1} parent=1 // pred_region
      %22 = vsyncadd [#allocation3], 0
      %s23 = sshll.u32 %s0, 4
      %s24 = int_to_ptr.hbm [resolvable:$true] %s23
      %s25 = sshll.u32 [#allocation2], 4
      %s26 = int_to_ptr.vmem [resolvable:$true] %s25
      %31 = dma.hbm_to_vmem [thread:$0]  %s24, 256, %s26, [#allocation3], 128, 128, 8
    $region5: #{tpu_custom_call.1} parent=1 // pred_fallthru
      _
    // Predicated region
    $region6: #{tpu_custom_call.1} parent=1 // pred_check
      _
    $region7: #{tpu_custom_call.1} parent=1 // pred_check_branch
      %33 = sbr.rel (0) target = $region9
    $region8: #{tpu_custom_call.1} parent=1 // pred_region
      %35 = vsyncadd [#allocation6], 0
      %s36 = sshll.u32 %s1, 4
      %s37 = int_to_ptr.hbm [resolvable:$true] %s36
      %s38 = sshll.u32 [#allocation5], 4
      %s39 = int_to_ptr.vmem [resolvable:$true] %s38
      %44 = dma.hbm_to_vmem [thread:$0]  %s37, 1024, %s39, [#allocation6], 256, 256, 16
    $region9: #{tpu_custom_call.1} parent=1 // pred_fallthru
      _
    // Predicated region
    $region10: #{tpu_custom_call.1} parent=1 // pred_check
      _
    $region11: #{tpu_custom_call.1} parent=1 // pred_check_branch
      %46 = sbr.rel (0) target = $region13
    $region12: #{tpu_custom_call.1} parent=1 // pred_region
      %48 = vsyncadd [#allocation6], 0
      %s50 = sshll.u32 %s2, 4
      %s51 = int_to_ptr.hbm [resolvable:$true] %s50
      %s52 = sshll.u32 [#allocation7], 4
      %s53 = int_to_ptr.vmem [resolvable:$true] %s52
      %55 = dma.hbm_to_vmem [thread:$0]  %s51, 32, %s53, [#allocation6]
    $region13: #{tpu_custom_call.1} parent=1 // pred_fallthru
      _
    // Predicated region
    $region14: #{tpu_custom_call.1} parent=1 // pred_check
      _
    $region15: #{tpu_custom_call.1} parent=1 // pred_check_branch
      %57 = sbr.rel (0) target = $region17
    $region16: #{tpu_custom_call.1} parent=1 // pred_region
      %59 = vsyncadd [#allocation9], 0
      %s60 = sshll.u32 %s3, 4
      %s61 = int_to_ptr.hbm [resolvable:$true] %s60
      %s62 = sshll.u32 [#allocation8], 4
      %s63 = int_to_ptr.vmem [resolvable:$true] %s62
      %68 = dma.hbm_to_vmem [thread:$0]  %s61, 16384, %s63, [#allocation9], 512, 512, 32
    $region17: #{tpu_custom_call.1} parent=1 // pred_fallthru
      _
    // Predicated region
    $region18: #{tpu_custom_call.1} parent=1 // pred_check
      _
    $region19: #{tpu_custom_call.1} parent=1 // pred_check_branch
      %70 = sbr.rel (0) target = $region21
    $region20: #{tpu_custom_call.1} parent=1 // pred_region
      %72 = vsyncadd [#allocation9], 0
      %s74 = sshll.u32 %s4, 4
      %s75 = int_to_ptr.hbm [resolvable:$true] %s74
      %s76 = sshll.u32 [#allocation10], 4
      %s77 = int_to_ptr.vmem [resolvable:$true] %s76
      %79 = dma.hbm_to_vmem [thread:$0]  %s75, 64, %s77, [#allocation9]
    $region21: #{tpu_custom_call.1} parent=1 // pred_fallthru
      _
    // Predicated region
    $region22: #{tpu_custom_call.1} parent=1 // pred_check
      _
    $region23: #{tpu_custom_call.1} parent=1 // pred_check_branch
      %81 = sbr.rel (0) target = $region25
    $region24: #{tpu_custom_call.1} parent=1 // pred_region
      %83 = vsyncadd [#allocation12], 0
      %s84 = sshll.u32 %s5, 4
      %s85 = int_to_ptr.hbm [resolvable:$true] %s84
      %s86 = sshll.u32 [#allocation11], 4
      %s87 = int_to_ptr.vmem [resolvable:$true] %s86
      %92 = dma.hbm_to_vmem [thread:$0]  %s85, 8192, %s87, [#allocation12], 128, 128, 8
    $region25: #{tpu_custom_call.1} parent=1 // pred_fallthru
      _
    // Predicated region
    $region26: #{tpu_custom_call.1} parent=1 // pred_check
      _
    $region27: #{tpu_custom_call.1} parent=1 // pred_check_branch
      %94 = sbr.rel (0) target = $region29
    $region28: #{tpu_custom_call.1} parent=1 // pred_region
      _
    $region29: #{tpu_custom_call.1} parent=1 // pred_fallthru
      _
    // Predicated region
    $region30: #{tpu_custom_call.1} parent=1 // pred_check
      _
    $region31: #{tpu_custom_call.1} parent=1 // pred_check_branch
      %96 = sbr.rel (0) target = $region33
    $region32: #{tpu_custom_call.1} parent=1 // pred_region
      %98 = vsyncadd [#allocation12], 0
      %s99 = sshll.u32 %s7, 4
      %s100 = int_to_ptr.hbm [resolvable:$true] %s99
      %s101 = sshll.u32 [#allocation13], 4
      %s102 = int_to_ptr.vmem [resolvable:$true] %s101
      %107 = dma.hbm_to_vmem [thread:$0]  %s100, 2048, %s102, [#allocation12], 128, 128, 8
    $region33: #{tpu_custom_call.1} parent=1 // pred_fallthru
      _
    // Predicated region
    $region34: #{tpu_custom_call.1} parent=1 // pred_check
      _
    $region35: #{tpu_custom_call.1} parent=1 // pred_check_branch
      %109 = sbr.rel (0) target = $region37
    $region36: #{tpu_custom_call.1} parent=1 // pred_region
      _
    $region37: #{tpu_custom_call.1} parent=1 // pred_fallthru
      _
    // Predicated region
    $region38: #{tpu_custom_call.1} parent=1 // pred_check
      _
    $region39: #{tpu_custom_call.1} parent=1 // pred_check_branch
      %111 = sbr.rel (0) target = $region41
    $region40: #{tpu_custom_call.1} parent=1 // pred_region
      %113 = dma.done [#allocation3], 256
    $region41: #{tpu_custom_call.1} parent=1 // pred_fallthru
      _
    // Predicated region
    $region42: #{tpu_custom_call.1} parent=1 // pred_check
      _
    $region43: #{tpu_custom_call.1} parent=1 // pred_check_branch
      %115 = sbr.rel (0) target = $region45
    $region44: #{tpu_custom_call.1} parent=1 // pred_region
      %117 = dma.done [#allocation6], 1024
    $region45: #{tpu_custom_call.1} parent=1 // pred_fallthru
      _
    // Predicated region
    $region46: #{tpu_custom_call.1} parent=1 // pred_check
      _
    $region47: #{tpu_custom_call.1} parent=1 // pred_check_branch
      %119 = sbr.rel (0) target = $region49
    $region48: #{tpu_custom_call.1} parent=1 // pred_region
      %121 = dma.done [#allocation6], 32
    $region49: #{tpu_custom_call.1} parent=1 // pred_fallthru
      _
    // Predicated region
    $region50: #{tpu_custom_call.1} parent=1 // pred_check
      _
    $region51: #{tpu_custom_call.1} parent=1 // pred_check_branch
      %123 = sbr.rel (0) target = $region53
    $region52: #{tpu_custom_call.1} parent=1 // pred_region
      %125 = dma.done [#allocation9], 16384
    $region53: #{tpu_custom_call.1} parent=1 // pred_fallthru
      _
    // Predicated region
    $region54: #{tpu_custom_call.1} parent=1 // pred_check
      _
    $region55: #{tpu_custom_call.1} parent=1 // pred_check_branch
      %127 = sbr.rel (0) target = $region57
    $region56: #{tpu_custom_call.1} parent=1 // pred_region
      %129 = dma.done [#allocation9], 64
    $region57: #{tpu_custom_call.1} parent=1 // pred_fallthru
      _
    // Predicated region
    $region58: #{tpu_custom_call.1} parent=1 // pred_check
      _
    $region59: #{tpu_custom_call.1} parent=1 // pred_check_branch
      %131 = sbr.rel (0) target = $region61
    $region60: #{tpu_custom_call.1} parent=1 // pred_region
      %133 = dma.done [#allocation12], 8192
    $region61: #{tpu_custom_call.1} parent=1 // pred_fallthru
      _
    // Predicated region
    $region62: #{tpu_custom_call.1} parent=1 // pred_check
      _
    $region63: #{tpu_custom_call.1} parent=1 // pred_check_branch
      %135 = sbr.rel (0) target = $region65
    $region64: #{tpu_custom_call.1} parent=1 // pred_region
      %137 = dma.done [#allocation12], 2048
    $region65: #{tpu_custom_call.1} parent=1 // pred_fallthru
      _
    %v138 = vld [vmem:[#allocation2] sm:$0xff]
    %v139 = vld [vmem:[#allocation2 + $0x8] sm:$0xff]
    %v140 = vld [vmem:[#allocation5] sm:$0xff]
    %v141 = vld [vmem:[#allocation5 + $0x8] sm:$0xff]
    %v142 = vld [vmem:[#allocation5 + $0x10] sm:$0xff]
    %v143 = vld [vmem:[#allocation5 + $0x18] sm:$0xff]
    %v144 = vld [vmem:[#allocation5 + $0x20] sm:$0xff]
    %v145 = vld [vmem:[#allocation5 + $0x28] sm:$0xff]
    %v146 = vld [vmem:[#allocation5 + $0x30] sm:$0xff]
    %v147 = vld [vmem:[#allocation5 + $0x38] sm:$0xff]
    %v148 = vld [vmem:[#allocation7] sm:$0x3]
    %v150 = vperm.slane %v148, 0
    %v151 = vperm.slane %v148, 1
    %vm154 = vcmask 261120
    %v156 = vsel %vm154, %v138, 0
    %v159 = vsel %vm154, %v139, 0
    %161 = vmatpush.msra.mxu0 0.0
    %162 = vmatpush.msra.mxu0 0.0
    %163 = vmatpush.msra.mxu0 0.0
    %164 = vmatpush.msra.mxu0 0.0
    %165 = vmatpush.msra.mxu0 0.0
    %166 = vmatpush.msra.mxu0 0.0
    %167 = vmatpush.msra.mxu0 0.0
    %168 = vmatpush.msra.mxu0 0.0
    %169 = vmatpush.msra.mxu0 0.0
    %170 = vmatpush.msra.mxu0 0.0
    %171 = vmatpush.msra.mxu0 0.0
    %172 = vmatpush.msra.mxu0 0.0
    %173 = vmatpush.msra.mxu0 %v146
    %174 = vmatpush.msra.mxu0 %v144
    %175 = vmatpush.msra.mxu0 %v142
    %176 = vmatpush.msra.mxu0 %v140
    %177 = vmatmul.f32.gmra.mxu0 %v156
    %v178 = vpop.f32.mrf.mxu0
    %v179 = vadd.f32 %v150, %v178
    %180 = vmatmul.f32.gmra.mxu0 %v159
    %v181 = vpop.f32.mrf.mxu0
    %v182 = vadd.f32 %v150, %v181
    %183 = vdwg.mxu0
    %184 = vmatpush.msra.mxu0 0.0
    %185 = vmatpush.msra.mxu0 0.0
    %186 = vmatpush.msra.mxu0 0.0
    %187 = vmatpush.msra.mxu0 0.0
    %188 = vmatpush.msra.mxu0 0.0
    %189 = vmatpush.msra.mxu0 0.0
    %190 = vmatpush.msra.mxu0 0.0
    %191 = vmatpush.msra.mxu0 0.0
    %192 = vmatpush.msra.mxu0 0.0
    %193 = vmatpush.msra.mxu0 0.0
    %194 = vmatpush.msra.mxu0 0.0
    %195 = vmatpush.msra.mxu0 0.0
    %196 = vmatpush.msra.mxu0 %v147
    %197 = vmatpush.msra.mxu0 %v145
    %198 = vmatpush.msra.mxu0 %v143
    %199 = vmatpush.msra.mxu0 %v141
    %200 = vmatmul.f32.gmra.mxu0 %v156
    %v201 = vpop.f32.mrf.mxu0
    %v202 = vadd.f32 %v151, %v201
    %203 = vmatmul.f32.gmra.mxu0 %v159
    %v204 = vpop.f32.mrf.mxu0
    %v205 = vadd.f32 %v151, %v204
    %206 = vdwg.mxu0
    %v207 = vmax.f32 %v179, 0.0
    %v208 = vmax.f32 %v202, 0.0
    %v209 = vmax.f32 %v182, 0.0
    %v210 = vmax.f32 %v205, 0.0
    %v211 = vld [vmem:[#allocation8] sm:$0xff]
    %v212 = vld [vmem:[#allocation8 + $0x8] sm:$0xff]
    %v213 = vld [vmem:[#allocation8 + $0x10] sm:$0xff]
    %v214 = vld [vmem:[#allocation8 + $0x18] sm:$0xff]
    %v215 = vld [vmem:[#allocation8 + $0x20] sm:$0xff]
    %v216 = vld [vmem:[#allocation8 + $0x28] sm:$0xff]
    %v217 = vld [vmem:[#allocation8 + $0x30] sm:$0xff]
    %v218 = vld [vmem:[#allocation8 + $0x38] sm:$0xff]
    %v219 = vld [vmem:[#allocation8 + $0x40] sm:$0xff]
    %v220 = vld [vmem:[#allocation8 + $0x48] sm:$0xff]
    %v221 = vld [vmem:[#allocation8 + $0x50] sm:$0xff]
    %v222 = vld [vmem:[#allocation8 + $0x58] sm:$0xff]
    %v223 = vld [vmem:[#allocation8 + $0x60] sm:$0xff]
    %v224 = vld [vmem:[#allocation8 + $0x68] sm:$0xff]
    %v225 = vld [vmem:[#allocation8 + $0x70] sm:$0xff]
    %v226 = vld [vmem:[#allocation8 + $0x78] sm:$0xff]
    %v227 = vld [vmem:[#allocation8 + $0x80] sm:$0xff]
    %v228 = vld [vmem:[#allocation8 + $0x88] sm:$0xff]
    %v229 = vld [vmem:[#allocation8 + $0x90] sm:$0xff]
    %v230 = vld [vmem:[#allocation8 + $0x98] sm:$0xff]
    %v231 = vld [vmem:[#allocation8 + $0xa0] sm:$0xff]
    %v232 = vld [vmem:[#allocation8 + $0xa8] sm:$0xff]
    %v233 = vld [vmem:[#allocation8 + $0xb0] sm:$0xff]
    %v234 = vld [vmem:[#allocation8 + $0xb8] sm:$0xff]
    %v235 = vld [vmem:[#allocation8 + $0xc0] sm:$0xff]
    %v236 = vld [vmem:[#allocation8 + $0xc8] sm:$0xff]
    %v237 = vld [vmem:[#allocation8 + $0xd0] sm:$0xff]
    %v238 = vld [vmem:[#allocation8 + $0xd8] sm:$0xff]
    %v239 = vld [vmem:[#allocation8 + $0xe0] sm:$0xff]
    %v240 = vld [vmem:[#allocation8 + $0xe8] sm:$0xff]
    %v241 = vld [vmem:[#allocation8 + $0xf0] sm:$0xff]
    %v242 = vld [vmem:[#allocation8 + $0xf8] sm:$0xff]
    %v243 = vld [vmem:[#allocation8 + $0x100] sm:$0xff]
    %v244 = vld [vmem:[#allocation8 + $0x108] sm:$0xff]
    %v245 = vld [vmem:[#allocation8 + $0x110] sm:$0xff]
    %v246 = vld [vmem:[#allocation8 + $0x118] sm:$0xff]
    %v247 = vld [vmem:[#allocation8 + $0x120] sm:$0xff]
    %v248 = vld [vmem:[#allocation8 + $0x128] sm:$0xff]
    %v249 = vld [vmem:[#allocation8 + $0x130] sm:$0xff]
    %v250 = vld [vmem:[#allocation8 + $0x138] sm:$0xff]
    %v251 = vld [vmem:[#allocation8 + $0x140] sm:$0xff]
    %v252 = vld [vmem:[#allocation8 + $0x148] sm:$0xff]
    %v253 = vld [vmem:[#allocation8 + $0x150] sm:$0xff]
    %v254 = vld [vmem:[#allocation8 + $0x158] sm:$0xff]
    %v255 = vld [vmem:[#allocation8 + $0x160] sm:$0xff]
    %v256 = vld [vmem:[#allocation8 + $0x168] sm:$0xff]
    %v257 = vld [vmem:[#allocation8 + $0x170] sm:$0xff]
    %v258 = vld [vmem:[#allocation8 + $0x178] sm:$0xff]
    %v259 = vld [vmem:[#allocation8 + $0x180] sm:$0xff]
    %v260 = vld [vmem:[#allocation8 + $0x188] sm:$0xff]
    %v261 = vld [vmem:[#allocation8 + $0x190] sm:$0xff]
    %v262 = vld [vmem:[#allocation8 + $0x198] sm:$0xff]
    %v263 = vld [vmem:[#allocation8 + $0x1a0] sm:$0xff]
    %v264 = vld [vmem:[#allocation8 + $0x1a8] sm:$0xff]
    %v265 = vld [vmem:[#allocation8 + $0x1b0] sm:$0xff]
    %v266 = vld [vmem:[#allocation8 + $0x1b8] sm:$0xff]
    %v267 = vld [vmem:[#allocation8 + $0x1c0] sm:$0xff]
    %v268 = vld [vmem:[#allocation8 + $0x1c8] sm:$0xff]
    %v269 = vld [vmem:[#allocation8 + $0x1d0] sm:$0xff]
    %v270 = vld [vmem:[#allocation8 + $0x1d8] sm:$0xff]
    %v271 = vld [vmem:[#allocation8 + $0x1e0] sm:$0xff]
    %v272 = vld [vmem:[#allocation8 + $0x1e8] sm:$0xff]
    %v273 = vld [vmem:[#allocation8 + $0x1f0] sm:$0xff]
    %v274 = vld [vmem:[#allocation8 + $0x1f8] sm:$0xff]
    %v275 = vld [vmem:[#allocation8 + $0x200] sm:$0xff]
    %v276 = vld [vmem:[#allocation8 + $0x208] sm:$0xff]
    %v277 = vld [vmem:[#allocation8 + $0x210] sm:$0xff]
    %v278 = vld [vmem:[#allocation8 + $0x218] sm:$0xff]
    %v279 = vld [vmem:[#allocation8 + $0x220] sm:$0xff]
    %v280 = vld [vmem:[#allocation8 + $0x228] sm:$0xff]
    %v281 = vld [vmem:[#allocation8 + $0x230] sm:$0xff]
    %v282 = vld [vmem:[#allocation8 + $0x238] sm:$0xff]
    %v283 = vld [vmem:[#allocation8 + $0x240] sm:$0xff]
    %v284 = vld [vmem:[#allocation8 + $0x248] sm:$0xff]
    %v285 = vld [vmem:[#allocation8 + $0x250] sm:$0xff]
    %v286 = vld [vmem:[#allocation8 + $0x258] sm:$0xff]
    %v287 = vld [vmem:[#allocation8 + $0x260] sm:$0xff]
    %v288 = vld [vmem:[#allocation8 + $0x268] sm:$0xff]
    %v289 = vld [vmem:[#allocation8 + $0x270] sm:$0xff]
    %v290 = vld [vmem:[#allocation8 + $0x278] sm:$0xff]
    %v291 = vld [vmem:[#allocation8 + $0x280] sm:$0xff]
    %v292 = vld [vmem:[#allocation8 + $0x288] sm:$0xff]
    %v293 = vld [vmem:[#allocation8 + $0x290] sm:$0xff]
    %v294 = vld [vmem:[#allocation8 + $0x298] sm:$0xff]
    %v295 = vld [vmem:[#allocation8 + $0x2a0] sm:$0xff]
    %v296 = vld [vmem:[#allocation8 + $0x2a8] sm:$0xff]
    %v297 = vld [vmem:[#allocation8 + $0x2b0] sm:$0xff]
    %v298 = vld [vmem:[#allocation8 + $0x2b8] sm:$0xff]
    %v299 = vld [vmem:[#allocation8 + $0x2c0] sm:$0xff]
    %v300 = vld [vmem:[#allocation8 + $0x2c8] sm:$0xff]
    %v301 = vld [vmem:[#allocation8 + $0x2d0] sm:$0xff]
    %v302 = vld [vmem:[#allocation8 + $0x2d8] sm:$0xff]
    %v303 = vld [vmem:[#allocation8 + $0x2e0] sm:$0xff]
    %v304 = vld [vmem:[#allocation8 + $0x2e8] sm:$0xff]
    %v305 = vld [vmem:[#allocation8 + $0x2f0] sm:$0xff]
    %v306 = vld [vmem:[#allocation8 + $0x2f8] sm:$0xff]
    %v307 = vld [vmem:[#allocation8 + $0x300] sm:$0xff]
    %v308 = vld [vmem:[#allocation8 + $0x308] sm:$0xff]
    %v309 = vld [vmem:[#allocation8 + $0x310] sm:$0xff]
    %v310 = vld [vmem:[#allocation8 + $0x318] sm:$0xff]
    %v311 = vld [vmem:[#allocation8 + $0x320] sm:$0xff]
    %v312 = vld [vmem:[#allocation8 + $0x328] sm:$0xff]
    %v313 = vld [vmem:[#allocation8 + $0x330] sm:$0xff]
    %v314 = vld [vmem:[#allocation8 + $0x338] sm:$0xff]
    %v315 = vld [vmem:[#allocation8 + $0x340] sm:$0xff]
    %v316 = vld [vmem:[#allocation8 + $0x348] sm:$0xff]
    %v317 = vld [vmem:[#allocation8 + $0x350] sm:$0xff]
    %v318 = vld [vmem:[#allocation8 + $0x358] sm:$0xff]
    %v319 = vld [vmem:[#allocation8 + $0x360] sm:$0xff]
    %v320 = vld [vmem:[#allocation8 + $0x368] sm:$0xff]
    %v321 = vld [vmem:[#allocation8 + $0x370] sm:$0xff]
    %v322 = vld [vmem:[#allocation8 + $0x378] sm:$0xff]
    %v323 = vld [vmem:[#allocation8 + $0x380] sm:$0xff]
    %v324 = vld [vmem:[#allocation8 + $0x388] sm:$0xff]
    %v325 = vld [vmem:[#allocation8 + $0x390] sm:$0xff]
    %v326 = vld [vmem:[#allocation8 + $0x398] sm:$0xff]
    %v327 = vld [vmem:[#allocation8 + $0x3a0] sm:$0xff]
    %v328 = vld [vmem:[#allocation8 + $0x3a8] sm:$0xff]
    %v329 = vld [vmem:[#allocation8 + $0x3b0] sm:$0xff]
    %v330 = vld [vmem:[#allocation8 + $0x3b8] sm:$0xff]
    %v331 = vld [vmem:[#allocation8 + $0x3c0] sm:$0xff]
    %v332 = vld [vmem:[#allocation8 + $0x3c8] sm:$0xff]
    %v333 = vld [vmem:[#allocation8 + $0x3d0] sm:$0xff]
    %v334 = vld [vmem:[#allocation8 + $0x3d8] sm:$0xff]
    %v335 = vld [vmem:[#allocation8 + $0x3e0] sm:$0xff]
    %v336 = vld [vmem:[#allocation8 + $0x3e8] sm:$0xff]
    %v337 = vld [vmem:[#allocation8 + $0x3f0] sm:$0xff]
    %v338 = vld [vmem:[#allocation8 + $0x3f8] sm:$0xff]
    %v339 = vld [vmem:[#allocation10] sm:$0xf]
    %v341 = vperm.slane %v339, 0
    %v342 = vperm.slane %v339, 1
    %v343 = vperm.slane %v339, 2
    %v344 = vperm.slane %v339, 3
    %349 = vmatpush.msra.mxu0 %v271
    %350 = vmatpush.msra.mxu0 %v267
    %351 = vmatpush.msra.mxu0 %v263
    %352 = vmatpush.msra.mxu0 %v259
    %353 = vmatpush.msra.mxu0 %v255
    %354 = vmatpush.msra.mxu0 %v251
    %355 = vmatpush.msra.mxu0 %v247
    %356 = vmatpush.msra.mxu0 %v243
    %357 = vmatpush.msra.mxu0 %v239
    %358 = vmatpush.msra.mxu0 %v235
    %359 = vmatpush.msra.mxu0 %v231
    %360 = vmatpush.msra.mxu0 %v227
    %361 = vmatpush.msra.mxu0 %v223
    %362 = vmatpush.msra.mxu0 %v219
    %363 = vmatpush.msra.mxu0 %v215
    %364 = vmatpush.msra.mxu0 %v211
    %365 = vmatmul.f32.gmra.mxu0 %v207
    %v366 = vpop.f32.mrf.mxu0
    %v367 = vadd.f32 %v341, %v366
    %368 = vmatmul.f32.gmra.mxu0 %v209
    %v369 = vpop.f32.mrf.mxu0
    %v370 = vadd.f32 %v341, %v369
    %371 = vdwg.mxu0
    %372 = vmatpush.msra.mxu0 %v335
    %373 = vmatpush.msra.mxu0 %v331
    %374 = vmatpush.msra.mxu0 %v327
    %375 = vmatpush.msra.mxu0 %v323
    %376 = vmatpush.msra.mxu0 %v319
    %377 = vmatpush.msra.mxu0 %v315
    %378 = vmatpush.msra.mxu0 %v311
    %379 = vmatpush.msra.mxu0 %v307
    %380 = vmatpush.msra.mxu0 %v303
    %381 = vmatpush.msra.mxu0 %v299
    %382 = vmatpush.msra.mxu0 %v295
    %383 = vmatpush.msra.mxu0 %v291
    %384 = vmatpush.msra.mxu0 %v287
    %385 = vmatpush.msra.mxu0 %v283
    %386 = vmatpush.msra.mxu0 %v279
    %387 = vmatpush.msra.mxu0 %v275
    %388 = vmatmul.f32.gmra.mxu0 %v208
    %v389 = vpop.f32.mrf.mxu0
    %v390 = vadd.f32 %v367, %v389
    %391 = vmatmul.f32.gmra.mxu0 %v210
    %v392 = vpop.f32.mrf.mxu0
    %v393 = vadd.f32 %v370, %v392
    %394 = vdwg.mxu0
    %395 = vmatpush.msra.mxu0 %v272
    %396 = vmatpush.msra.mxu0 %v268
    %397 = vmatpush.msra.mxu0 %v264
    %398 = vmatpush.msra.mxu0 %v260
    %399 = vmatpush.msra.mxu0 %v256
    %400 = vmatpush.msra.mxu0 %v252
    %401 = vmatpush.msra.mxu0 %v248
    %402 = vmatpush.msra.mxu0 %v244
    %403 = vmatpush.msra.mxu0 %v240
    %404 = vmatpush.msra.mxu0 %v236
    %405 = vmatpush.msra.mxu0 %v232
    %406 = vmatpush.msra.mxu0 %v228
    %407 = vmatpush.msra.mxu0 %v224
    %408 = vmatpush.msra.mxu0 %v220
    %409 = vmatpush.msra.mxu0 %v216
    %410 = vmatpush.msra.mxu0 %v212
    %411 = vmatmul.f32.gmra.mxu0 %v207
    %v412 = vpop.f32.mrf.mxu0
    %v413 = vadd.f32 %v342, %v412
    %414 = vmatmul.f32.gmra.mxu0 %v209
    %v415 = vpop.f32.mrf.mxu0
    %v416 = vadd.f32 %v342, %v415
    %417 = vdwg.mxu0
    %418 = vmatpush.msra.mxu0 %v336
    %419 = vmatpush.msra.mxu0 %v332
    %420 = vmatpush.msra.mxu0 %v328
    %421 = vmatpush.msra.mxu0 %v324
    %422 = vmatpush.msra.mxu0 %v320
    %423 = vmatpush.msra.mxu0 %v316
    %424 = vmatpush.msra.mxu0 %v312
    %425 = vmatpush.msra.mxu0 %v308
    %426 = vmatpush.msra.mxu0 %v304
    %427 = vmatpush.msra.mxu0 %v300
    %428 = vmatpush.msra.mxu0 %v296
    %429 = vmatpush.msra.mxu0 %v292
    %430 = vmatpush.msra.mxu0 %v288
    %431 = vmatpush.msra.mxu0 %v284
    %432 = vmatpush.msra.mxu0 %v280
    %433 = vmatpush.msra.mxu0 %v276
    %434 = vmatmul.f32.gmra.mxu0 %v208
    %v435 = vpop.f32.mrf.mxu0
    %v436 = vadd.f32 %v413, %v435
    %437 = vmatmul.f32.gmra.mxu0 %v210
    %v438 = vpop.f32.mrf.mxu0
    %v439 = vadd.f32 %v416, %v438
    %440 = vdwg.mxu0
    %441 = vmatpush.msra.mxu0 %v273
    %442 = vmatpush.msra.mxu0 %v269
    %443 = vmatpush.msra.mxu0 %v265
    %444 = vmatpush.msra.mxu0 %v261
    %445 = vmatpush.msra.mxu0 %v257
    %446 = vmatpush.msra.mxu0 %v253
    %447 = vmatpush.msra.mxu0 %v249
    %448 = vmatpush.msra.mxu0 %v245
    %449 = vmatpush.msra.mxu0 %v241
    %450 = vmatpush.msra.mxu0 %v237
    %451 = vmatpush.msra.mxu0 %v233
    %452 = vmatpush.msra.mxu0 %v229
    %453 = vmatpush.msra.mxu0 %v225
    %454 = vmatpush.msra.mxu0 %v221
    %455 = vmatpush.msra.mxu0 %v217
    %456 = vmatpush.msra.mxu0 %v213
    %457 = vmatmul.f32.gmra.mxu0 %v207
    %v458 = vpop.f32.mrf.mxu0
    %v459 = vadd.f32 %v343, %v458
    %460 = vmatmul.f32.gmra.mxu0 %v209
    %v461 = vpop.f32.mrf.mxu0
    %v462 = vadd.f32 %v343, %v461
    %463 = vdwg.mxu0
    %464 = vmatpush.msra.mxu0 %v337
    %465 = vmatpush.msra.mxu0 %v333
    %466 = vmatpush.msra.mxu0 %v329
    %467 = vmatpush.msra.mxu0 %v325
    %468 = vmatpush.msra.mxu0 %v321
    %469 = vmatpush.msra.mxu0 %v317
    %470 = vmatpush.msra.mxu0 %v313
    %471 = vmatpush.msra.mxu0 %v309
    %472 = vmatpush.msra.mxu0 %v305
    %473 = vmatpush.msra.mxu0 %v301
    %474 = vmatpush.msra.mxu0 %v297
    %475 = vmatpush.msra.mxu0 %v293
    %476 = vmatpush.msra.mxu0 %v289
    %477 = vmatpush.msra.mxu0 %v285
    %478 = vmatpush.msra.mxu0 %v281
    %479 = vmatpush.msra.mxu0 %v277
    %480 = vmatmul.f32.gmra.mxu0 %v208
    %v481 = vpop.f32.mrf.mxu0
    %v482 = vadd.f32 %v459, %v481
    %483 = vmatmul.f32.gmra.mxu0 %v210
    %v484 = vpop.f32.mrf.mxu0
    %v485 = vadd.f32 %v462, %v484
    %486 = vdwg.mxu0
    %487 = vmatpush.msra.mxu0 %v274
    %488 = vmatpush.msra.mxu0 %v270
    %489 = vmatpush.msra.mxu0 %v266
    %490 = vmatpush.msra.mxu0 %v262
    %491 = vmatpush.msra.mxu0 %v258
    %492 = vmatpush.msra.mxu0 %v254
    %493 = vmatpush.msra.mxu0 %v250
    %494 = vmatpush.msra.mxu0 %v246
    %495 = vmatpush.msra.mxu0 %v242
    %496 = vmatpush.msra.mxu0 %v238
    %497 = vmatpush.msra.mxu0 %v234
    %498 = vmatpush.msra.mxu0 %v230
    %499 = vmatpush.msra.mxu0 %v226
    %500 = vmatpush.msra.mxu0 %v222
    %501 = vmatpush.msra.mxu0 %v218
    %502 = vmatpush.msra.mxu0 %v214
    %503 = vmatmul.f32.gmra.mxu0 %v207
    %v504 = vpop.f32.mrf.mxu0
    %v505 = vadd.f32 %v344, %v504
    %506 = vmatmul.f32.gmra.mxu0 %v209
    %v507 = vpop.f32.mrf.mxu0
    %v508 = vadd.f32 %v344, %v507
    %509 = vdwg.mxu0
    %510 = vmatpush.msra.mxu0 %v338
    %511 = vmatpush.msra.mxu0 %v334
    %512 = vmatpush.msra.mxu0 %v330
    %513 = vmatpush.msra.mxu0 %v326
    %514 = vmatpush.msra.mxu0 %v322
    %515 = vmatpush.msra.mxu0 %v318
    %516 = vmatpush.msra.mxu0 %v314
    %517 = vmatpush.msra.mxu0 %v310
    %518 = vmatpush.msra.mxu0 %v306
    %519 = vmatpush.msra.mxu0 %v302
    %520 = vmatpush.msra.mxu0 %v298
    %521 = vmatpush.msra.mxu0 %v294
    %522 = vmatpush.msra.mxu0 %v290
    %523 = vmatpush.msra.mxu0 %v286
    %524 = vmatpush.msra.mxu0 %v282
    %525 = vmatpush.msra.mxu0 %v278
    %526 = vmatmul.f32.gmra.mxu0 %v208
    %v527 = vpop.f32.mrf.mxu0
    %v528 = vadd.f32 %v505, %v527
    %529 = vmatmul.f32.gmra.mxu0 %v210
    %v530 = vpop.f32.mrf.mxu0
    %v531 = vadd.f32 %v508, %v530
    %532 = vdwg.mxu0
    %v533 = vmax.f32 %v390, 0.0
    %v534 = vmax.f32 %v436, 0.0
    %v535 = vmax.f32 %v482, 0.0
    %v536 = vmax.f32 %v528, 0.0
    %v537 = vmax.f32 %v393, 0.0
    %v538 = vmax.f32 %v439, 0.0
    %v539 = vmax.f32 %v485, 0.0
    %v540 = vmax.f32 %v531, 0.0
    %v541 = vld [vmem:[#allocation11] sm:$0xff]
    %v542 = vld [vmem:[#allocation11 + $0x8] sm:$0xff]
    %v543 = vld [vmem:[#allocation11 + $0x10] sm:$0xff]
    %v544 = vld [vmem:[#allocation11 + $0x18] sm:$0xff]
    %v545 = vld [vmem:[#allocation11 + $0x20] sm:$0xff]
    %v546 = vld [vmem:[#allocation11 + $0x28] sm:$0xff]
    %v547 = vld [vmem:[#allocation11 + $0x30] sm:$0xff]
    %v548 = vld [vmem:[#allocation11 + $0x38] sm:$0xff]
    %v549 = vld [vmem:[#allocation11 + $0x40] sm:$0xff]
    %v550 = vld [vmem:[#allocation11 + $0x48] sm:$0xff]
    %v551 = vld [vmem:[#allocation11 + $0x50] sm:$0xff]
    %v552 = vld [vmem:[#allocation11 + $0x58] sm:$0xff]
    %v553 = vld [vmem:[#allocation11 + $0x60] sm:$0xff]
    %v554 = vld [vmem:[#allocation11 + $0x68] sm:$0xff]
    %v555 = vld [vmem:[#allocation11 + $0x70] sm:$0xff]
    %v556 = vld [vmem:[#allocation11 + $0x78] sm:$0xff]
    %v557 = vld [vmem:[#allocation11 + $0x80] sm:$0xff]
    %v558 = vld [vmem:[#allocation11 + $0x88] sm:$0xff]
    %v559 = vld [vmem:[#allocation11 + $0x90] sm:$0xff]
    %v560 = vld [vmem:[#allocation11 + $0x98] sm:$0xff]
    %v561 = vld [vmem:[#allocation11 + $0xa0] sm:$0xff]
    %v562 = vld [vmem:[#allocation11 + $0xa8] sm:$0xff]
    %v563 = vld [vmem:[#allocation11 + $0xb0] sm:$0xff]
    %v564 = vld [vmem:[#allocation11 + $0xb8] sm:$0xff]
    %v565 = vld [vmem:[#allocation11 + $0xc0] sm:$0xff]
    %v566 = vld [vmem:[#allocation11 + $0xc8] sm:$0xff]
    %v567 = vld [vmem:[#allocation11 + $0xd0] sm:$0xff]
    %v568 = vld [vmem:[#allocation11 + $0xd8] sm:$0xff]
    %v569 = vld [vmem:[#allocation11 + $0xe0] sm:$0xff]
    %v570 = vld [vmem:[#allocation11 + $0xe8] sm:$0xff]
    %v571 = vld [vmem:[#allocation11 + $0xf0] sm:$0xff]
    %v572 = vld [vmem:[#allocation11 + $0xf8] sm:$0xff]
    %v573 = vld [vmem:[#allocation11 + $0x100] sm:$0xff]
    %v574 = vld [vmem:[#allocation11 + $0x108] sm:$0xff]
    %v575 = vld [vmem:[#allocation11 + $0x110] sm:$0xff]
    %v576 = vld [vmem:[#allocation11 + $0x118] sm:$0xff]
    %v577 = vld [vmem:[#allocation11 + $0x120] sm:$0xff]
    %v578 = vld [vmem:[#allocation11 + $0x128] sm:$0xff]
    %v579 = vld [vmem:[#allocation11 + $0x130] sm:$0xff]
    %v580 = vld [vmem:[#allocation11 + $0x138] sm:$0xff]
    %v581 = vld [vmem:[#allocation11 + $0x140] sm:$0xff]
    %v582 = vld [vmem:[#allocation11 + $0x148] sm:$0xff]
    %v583 = vld [vmem:[#allocation11 + $0x150] sm:$0xff]
    %v584 = vld [vmem:[#allocation11 + $0x158] sm:$0xff]
    %v585 = vld [vmem:[#allocation11 + $0x160] sm:$0xff]
    %v586 = vld [vmem:[#allocation11 + $0x168] sm:$0xff]
    %v587 = vld [vmem:[#allocation11 + $0x170] sm:$0xff]
    %v588 = vld [vmem:[#allocation11 + $0x178] sm:$0xff]
    %v589 = vld [vmem:[#allocation11 + $0x180] sm:$0xff]
    %v590 = vld [vmem:[#allocation11 + $0x188] sm:$0xff]
    %v591 = vld [vmem:[#allocation11 + $0x190] sm:$0xff]
    %v592 = vld [vmem:[#allocation11 + $0x198] sm:$0xff]
    %v593 = vld [vmem:[#allocation11 + $0x1a0] sm:$0xff]
    %v594 = vld [vmem:[#allocation11 + $0x1a8] sm:$0xff]
    %v595 = vld [vmem:[#allocation11 + $0x1b0] sm:$0xff]
    %v596 = vld [vmem:[#allocation11 + $0x1b8] sm:$0xff]
    %v597 = vld [vmem:[#allocation11 + $0x1c0] sm:$0xff]
    %v598 = vld [vmem:[#allocation11 + $0x1c8] sm:$0xff]
    %v599 = vld [vmem:[#allocation11 + $0x1d0] sm:$0xff]
    %v600 = vld [vmem:[#allocation11 + $0x1d8] sm:$0xff]
    %v601 = vld [vmem:[#allocation11 + $0x1e0] sm:$0xff]
    %v602 = vld [vmem:[#allocation11 + $0x1e8] sm:$0xff]
    %v603 = vld [vmem:[#allocation11 + $0x1f0] sm:$0xff]
    %v604 = vld [vmem:[#allocation11 + $0x1f8] sm:$0xff]
    %v605 = vld [vmem:[%s6] sm:$0x1]
    %v607 = vperm.slane %v605, 0
    %609 = vmatpush.msra.mxu0 %v556
    %610 = vmatpush.msra.mxu0 %v555
    %611 = vmatpush.msra.mxu0 %v554
    %612 = vmatpush.msra.mxu0 %v553
    %613 = vmatpush.msra.mxu0 %v552
    %614 = vmatpush.msra.mxu0 %v551
    %615 = vmatpush.msra.mxu0 %v550
    %616 = vmatpush.msra.mxu0 %v549
    %617 = vmatpush.msra.mxu0 %v548
    %618 = vmatpush.msra.mxu0 %v547
    %619 = vmatpush.msra.mxu0 %v546
    %620 = vmatpush.msra.mxu0 %v545
    %621 = vmatpush.msra.mxu0 %v544
    %622 = vmatpush.msra.mxu0 %v543
    %623 = vmatpush.msra.mxu0 %v542
    %624 = vmatpush.msra.mxu0 %v541
    %625 = vmatmul.f32.gmra.mxu0 %v533
    %v626 = vpop.f32.mrf.mxu0
    %v627 = vadd.f32 %v607, %v626
    %628 = vmatmul.f32.gmra.mxu0 %v537
    %v629 = vpop.f32.mrf.mxu0
    %v630 = vadd.f32 %v607, %v629
    %631 = vdwg.mxu0
    %632 = vmatpush.msra.mxu0 %v572
    %633 = vmatpush.msra.mxu0 %v571
    %634 = vmatpush.msra.mxu0 %v570
    %635 = vmatpush.msra.mxu0 %v569
    %636 = vmatpush.msra.mxu0 %v568
    %637 = vmatpush.msra.mxu0 %v567
    %638 = vmatpush.msra.mxu0 %v566
    %639 = vmatpush.msra.mxu0 %v565
    %640 = vmatpush.msra.mxu0 %v564
    %641 = vmatpush.msra.mxu0 %v563
    %642 = vmatpush.msra.mxu0 %v562
    %643 = vmatpush.msra.mxu0 %v561
    %644 = vmatpush.msra.mxu0 %v560
    %645 = vmatpush.msra.mxu0 %v559
    %646 = vmatpush.msra.mxu0 %v558
    %647 = vmatpush.msra.mxu0 %v557
    %648 = vmatmul.f32.gmra.mxu0 %v534
    %v649 = vpop.f32.mrf.mxu0
    %v650 = vadd.f32 %v627, %v649
    %651 = vmatmul.f32.gmra.mxu0 %v538
    %v652 = vpop.f32.mrf.mxu0
    %v653 = vadd.f32 %v630, %v652
    %654 = vdwg.mxu0
    %655 = vmatpush.msra.mxu0 %v588
    %656 = vmatpush.msra.mxu0 %v587
    %657 = vmatpush.msra.mxu0 %v586
    %658 = vmatpush.msra.mxu0 %v585
    %659 = vmatpush.msra.mxu0 %v584
    %660 = vmatpush.msra.mxu0 %v583
    %661 = vmatpush.msra.mxu0 %v582
    %662 = vmatpush.msra.mxu0 %v581
    %663 = vmatpush.msra.mxu0 %v580
    %664 = vmatpush.msra.mxu0 %v579
    %665 = vmatpush.msra.mxu0 %v578
    %666 = vmatpush.msra.mxu0 %v577
    %667 = vmatpush.msra.mxu0 %v576
    %668 = vmatpush.msra.mxu0 %v575
    %669 = vmatpush.msra.mxu0 %v574
    %670 = vmatpush.msra.mxu0 %v573
    %671 = vmatmul.f32.gmra.mxu0 %v535
    %v672 = vpop.f32.mrf.mxu0
    %v673 = vadd.f32 %v650, %v672
    %674 = vmatmul.f32.gmra.mxu0 %v539
    %v675 = vpop.f32.mrf.mxu0
    %v676 = vadd.f32 %v653, %v675
    %677 = vdwg.mxu0
    %678 = vmatpush.msra.mxu0 %v604
    %679 = vmatpush.msra.mxu0 %v603
    %680 = vmatpush.msra.mxu0 %v602
    %681 = vmatpush.msra.mxu0 %v601
    %682 = vmatpush.msra.mxu0 %v600
    %683 = vmatpush.msra.mxu0 %v599
    %684 = vmatpush.msra.mxu0 %v598
    %685 = vmatpush.msra.mxu0 %v597
    %686 = vmatpush.msra.mxu0 %v596
    %687 = vmatpush.msra.mxu0 %v595
    %688 = vmatpush.msra.mxu0 %v594
    %689 = vmatpush.msra.mxu0 %v593
    %690 = vmatpush.msra.mxu0 %v592
    %691 = vmatpush.msra.mxu0 %v591
    %692 = vmatpush.msra.mxu0 %v590
    %693 = vmatpush.msra.mxu0 %v589
    %694 = vmatmul.f32.gmra.mxu0 %v536
    %v695 = vpop.f32.mrf.mxu0
    %v696 = vadd.f32 %v673, %v695
    %697 = vmatmul.f32.gmra.mxu0 %v540
    %v698 = vpop.f32.mrf.mxu0
    %v699 = vadd.f32 %v676, %v698
    %700 = vdwg.mxu0
    %v701 = vmax.f32 %v696, 0.0
    %v702 = vmax.f32 %v699, 0.0
    %v703 = vld [vmem:[#allocation13] sm:$0xff]
    %v704 = vld [vmem:[#allocation13 + $0x8] sm:$0xff]
    %v705 = vld [vmem:[#allocation13 + $0x10] sm:$0xff]
    %v706 = vld [vmem:[#allocation13 + $0x18] sm:$0xff]
    %v707 = vld [vmem:[#allocation13 + $0x20] sm:$0xff]
    %v708 = vld [vmem:[#allocation13 + $0x28] sm:$0xff]
    %v709 = vld [vmem:[#allocation13 + $0x30] sm:$0xff]
    %v710 = vld [vmem:[#allocation13 + $0x38] sm:$0xff]
    %v711 = vld [vmem:[#allocation13 + $0x40] sm:$0xff]
    %v712 = vld [vmem:[#allocation13 + $0x48] sm:$0xff]
    %v713 = vld [vmem:[#allocation13 + $0x50] sm:$0xff]
    %v714 = vld [vmem:[#allocation13 + $0x58] sm:$0xff]
    %v715 = vld [vmem:[#allocation13 + $0x60] sm:$0xff]
    %v716 = vld [vmem:[#allocation13 + $0x68] sm:$0xff]
    %v717 = vld [vmem:[#allocation13 + $0x70] sm:$0xff]
    %v718 = vld [vmem:[#allocation13 + $0x78] sm:$0xff]
    %v719 = vld [vmem:[%s8] sm:$0x1]
    %v721 = vperm.slane %v719, 0
    %723 = vmatpush.msra.mxu0 %v718
    %724 = vmatpush.msra.mxu0 %v717
    %725 = vmatpush.msra.mxu0 %v716
    %726 = vmatpush.msra.mxu0 %v715
    %727 = vmatpush.msra.mxu0 %v714
    %728 = vmatpush.msra.mxu0 %v713
    %729 = vmatpush.msra.mxu0 %v712
    %730 = vmatpush.msra.mxu0 %v711
    %731 = vmatpush.msra.mxu0 %v710
    %732 = vmatpush.msra.mxu0 %v709
    %733 = vmatpush.msra.mxu0 %v708
    %734 = vmatpush.msra.mxu0 %v707
    %735 = vmatpush.msra.mxu0 %v706
    %736 = vmatpush.msra.mxu0 %v705
    %737 = vmatpush.msra.mxu0 %v704
    %738 = vmatpush.msra.mxu0 %v703
    %739 = vmatmul.f32.gmra.mxu0 %v701
    %v740 = vpop.f32.mrf.mxu0
    %v741 = vadd.f32 %v721, %v740
    %742 = vmatmul.f32.gmra.mxu0 %v702
    %v743 = vpop.f32.mrf.mxu0
    %v744 = vadd.f32 %v721, %v743
    %745 = vdwg.mxu0
    %746 = vst [vmem:[#allocation14] sm:$0xff] %v741
    %747 = vst [vmem:[#allocation14 + $0x8] sm:$0xff] %v744
    // Predicated region
    $region66: #{tpu_custom_call.1} parent=1 // pred_check
      _
    $region67: #{tpu_custom_call.1} parent=1 // pred_check_branch
      %749 = sbr.rel (0) target = $region69
    $region68: #{tpu_custom_call.1} parent=1 // pred_region
      %751 = vsyncadd [#allocation4], 0
      %s752 = sshll.u32 [#allocation14], 4
      %s753 = int_to_ptr.vmem [resolvable:$true] %s752
      %s754 = sshll.u32 %s9, 4
      %s755 = int_to_ptr.hbm [resolvable:$true] %s754
      %760 = dma.vmem_to_hbm [thread:$0]  %s753, 256, %s755, [#allocation4], 128, 128, 8
    $region69: #{tpu_custom_call.1} parent=1 // pred_fallthru
      _
    // Predicated region
    $region70: #{tpu_custom_call.1} parent=1 // pred_check
      _
    $region71: #{tpu_custom_call.1} parent=1 // pred_check_branch
      %762 = sbr.rel (0) target = $region73
    $region72: #{tpu_custom_call.1} parent=1 // pred_region
      %764 = dma.done [#allocation4], 256
    $region73: #{tpu_custom_call.1} parent=1 // pred_fallthru
      _
    %765 = vsyncpa [#allocation3], 1
    %766 = vsyncpa [#allocation6], 1
    %767 = vsyncpa [#allocation9], 1
    %768 = vsyncpa [#allocation12], 1
    %769 = vsyncpa [#allocation4], 1

</llo_original>
